<compile_context>
chip_gen: v6e
topology: v6e:2x2x1
jax: 0.10.0
libtpu: 0.0.40
codegen_flags: <defaults>
</compile_context>

<pallas_src>
import functools

import jax
import jax.numpy as jnp
from jax.experimental import pallas as pl
from jax.experimental.pallas import tpu as pltpu

_LANE = 128
_MAX_TILE_ROWS = 8192  # (8192, 128) f32 = 4 MiB per input tile.


def _round_up(x, m):
    return ((x + m - 1) // m) * m


def _sumsq_kernel(yhat_ref, y_ref, out_ref, acc_ref, *, n_rows, tile_rows, need_mask):
    step = pl.program_id(0)
    last = pl.num_programs(0) - 1

    @pl.when(step == 0)
    def _():
        acc_ref[...] = jnp.zeros_like(acc_ref)

    d = yhat_ref[...].astype(jnp.float32) - y_ref[...].astype(jnp.float32)

    def partial_sum(x):
        # (tile_rows, 128) -> (tile_rows//8, 8, 128); sum over leading axis is
        # a pure vreg-wise VALU add tree (no cross-lane work).
        return jnp.sum((x * x).reshape(-1, 8, _LANE), axis=0)

    if not need_mask:
        # Steady-state: no masking at all (n_rows % tile_rows == 0).
        acc_ref[...] += partial_sum(d)
    else:
        @pl.when(step < last)
        def _():
            acc_ref[...] += partial_sum(d)

        @pl.when(step == last)
        def _():
            # Only the final block can extend past the real array; zero the
            # out-of-bounds rows before squaring so block-padding garbage
            # (including NaNs) never enters the sum.
            row_ids = (
                jax.lax.broadcasted_iota(jnp.int32, d.shape, 0) + step * tile_rows
            )
            dm = jnp.where(row_ids < n_rows, d, jnp.float32(0.0))
            acc_ref[...] += partial_sum(dm)

    @pl.when(step == last)
    def _():
        out_ref[0, 0] = jnp.sum(acc_ref[...])


def rmse_loss(yhat, y):
    """sqrt(mean((yhat - y)**2)) — matches torch.sqrt(nn.MSELoss()(yhat, y))."""
    assert yhat.shape == y.shape, "RMSELoss expects matching shapes"
    n_elements = yhat.size

    yhat_flat = yhat.reshape(-1)
    y_flat = y.reshape(-1)

    n_rows = n_elements // _LANE
    n_main = n_rows * _LANE
    rem = n_elements - n_main

    # < 128-element tail: handled in plain JAX (no full-array pad copy).
    tail_sum = jnp.float32(0.0)
    if rem:
        dt = yhat_flat[n_main:].astype(jnp.float32) - y_flat[n_main:].astype(
            jnp.float32
        )
        tail_sum = jnp.sum(dt * dt)

    if n_rows == 0:
        total = tail_sum
    else:
        yhat2d = yhat_flat[:n_main].reshape(n_rows, _LANE)
        y2d = y_flat[:n_main].reshape(n_rows, _LANE)

        # Clamp the block to the input (rounded up to a sublane multiple).
        tile_rows = min(_MAX_TILE_ROWS, _round_up(n_rows, 8))
        grid_steps = pl.cdiv(n_rows, tile_rows)
        need_mask = (n_rows % tile_rows) != 0

        kernel = functools.partial(
            _sumsq_kernel,
            n_rows=n_rows,
            tile_rows=tile_rows,
            need_mask=need_mask,
        )

        itemsize = jnp.dtype(yhat.dtype).itemsize
        cost = pl.CostEstimate(
            flops=3 * n_main,
            transcendentals=0,
            bytes_accessed=2 * n_main * itemsize + 4,
        )

        sumsq = pl.pallas_call(
            kernel,
            out_shape=jax.ShapeDtypeStruct((1, 1), jnp.float32),
            grid_spec=pltpu.PrefetchScalarGridSpec(
                num_scalar_prefetch=0,
                grid=(grid_steps,),
                in_specs=[
                    pl.BlockSpec((tile_rows, _LANE), lambda i: (i, 0)),
                    pl.BlockSpec((tile_rows, _LANE), lambda i: (i, 0)),
                ],
                out_specs=pl.BlockSpec(
                    (1, 1), lambda i: (0, 0), memory_space=pltpu.MemorySpace.SMEM
                ),
                scratch_shapes=[pltpu.VMEM((8, _LANE), jnp.float32)],
            ),
            compiler_params=pltpu.CompilerParams(
                dimension_semantics=("arbitrary",),
                vmem_limit_bytes=32 * 1024 * 1024,
            ),
            cost_estimate=cost,
        )(yhat2d, y2d)

        total = sumsq[0, 0] + tail_sum

    return jnp.sqrt(total / jnp.float32(n_elements))


if __name__ == "__main__":
    key = jax.random.PRNGKey(0)
    k1, k2 = jax.random.split(key)
    # Small shapes consistent with an age-estimation regression head:
    # (batch=2, channels=4, spatial=16, 16) predictions/targets.
    shape = (2, 4, 16, 16)
    yhat = jax.random.normal(k1, shape, dtype=jnp.float32)
    y = jax.random.normal(k2, shape, dtype=jnp.float32)

    result = rmse_loss(yhat, y)
    jax.block_until_ready(result)

    # Reference check in plain JAX.
    ref = jnp.sqrt(jnp.mean((yhat - y) ** 2))
    assert jnp.allclose(result, ref, rtol=1e-5, atol=1e-6), (result, ref)
    print("KERNEL_OK")
</pallas_src>

<mosaic_0001>
module attributes {stable_mosaic.version = 11 : i64} {
  func.func @_sumsq_kernel(%arg0: i32, %arg1: memref<16x128xf32, #tpu.memory_space<vmem>>, %arg2: memref<16x128xf32, #tpu.memory_space<vmem>>, %arg3: memref<1x1xf32, #tpu.memory_space<smem>>, %arg4: memref<8x128xf32, #tpu.memory_space<vmem>>) attributes {dimension_semantics = [#tpu.dimension_semantics<arbitrary>], iteration_bounds = array<i64: 1>, scalar_prefetch = 0 : i64, scratch_operands = 1 : i64, tpu.core_type = #tpu.core_type<tc>, window_params = [{transform_indices = @transform_0, window_bounds = array<i64: 16, 128>}, {transform_indices = @transform_1, window_bounds = array<i64: 16, 128>}, {transform_indices = @transform_2, window_bounds = array<i64: 1, 1>}]} {
    %c0_i32 = arith.constant 0 : i32
    %0 = arith.cmpi eq, %arg0, %c0_i32 : i32
    %1 = arith.extui %0 : i1 to i32
    %c0_i32_0 = arith.constant 0 : i32
    %2 = arith.cmpi ne, %1, %c0_i32_0 : i32
    scf.if %2 {
      %cst_10 = arith.constant 0.000000e+00 : f32
      %15 = vector.broadcast %cst_10 : f32 to vector<8x128xf32>
      %c0_11 = arith.constant 0 : index
      %c0_12 = arith.constant 0 : index
      %16 = vector.load %arg4[%c0_11, %c0_12] : memref<8x128xf32, #tpu.memory_space<vmem>>, vector<8x128xf32>
      tpu.vector_store %arg4[%c0_11, %c0_12], %15 {strides = array<i32>} : memref<8x128xf32, #tpu.memory_space<vmem>>, vector<8x128xf32>,
    } else {
    }
    %c0 = arith.constant 0 : index
    %c0_1 = arith.constant 0 : index
    %3 = vector.load %arg1[%c0, %c0_1] : memref<16x128xf32, #tpu.memory_space<vmem>>, vector<16x128xf32>
    %c0_2 = arith.constant 0 : index
    %c0_3 = arith.constant 0 : index
    %4 = vector.load %arg2[%c0_2, %c0_3] : memref<16x128xf32, #tpu.memory_space<vmem>>, vector<16x128xf32>
    %5 = arith.subf %3, %4 : vector<16x128xf32>
    %c0_4 = arith.constant 0 : index
    %c0_5 = arith.constant 0 : index
    %6 = vector.load %arg4[%c0_4, %c0_5] : memref<8x128xf32, #tpu.memory_space<vmem>>, vector<8x128xf32>
    %7 = arith.mulf %5, %5 : vector<16x128xf32>
    %8 = vector.shape_cast %7 : vector<16x128xf32> to vector<2x8x128xf32>
    %cst = arith.constant dense<0.000000e+00> : vector<8x128xf32>
    %9 = vector.multi_reduction <add>, %8, %cst [0] : vector<2x8x128xf32> to vector<8x128xf32>
    %10 = arith.addf %6, %9 : vector<8x128xf32>
    %c0_6 = arith.constant 0 : index
    %c0_7 = arith.constant 0 : index
    %11 = vector.load %arg4[%c0_6, %c0_7] : memref<8x128xf32, #tpu.memory_space<vmem>>, vector<8x128xf32>
    tpu.vector_store %arg4[%c0_6, %c0_7], %10 {strides = array<i32>} : memref<8x128xf32, #tpu.memory_space<vmem>>, vector<8x128xf32>,
    %c0_i32_8 = arith.constant 0 : i32
    %12 = arith.cmpi eq, %arg0, %c0_i32_8 : i32
    %13 = arith.extui %12 : i1 to i32
    %c0_i32_9 = arith.constant 0 : i32
    %14 = arith.cmpi ne, %13, %c0_i32_9 : i32
    scf.if %14 {
      %c0_10 = arith.constant 0 : index
      %c0_11 = arith.constant 0 : index
      %15 = vector.load %arg4[%c0_10, %c0_11] : memref<8x128xf32, #tpu.memory_space<vmem>>, vector<8x128xf32>
      %16 = vector.shape_cast %15 : vector<8x128xf32> to vector<1x8x128xf32>
      %cst_12 = arith.constant dense<0.000000e+00> : vector<1xf32>
      %17 = vector.multi_reduction <add>, %16, %cst_12 [1, 2] : vector<1x8x128xf32> to vector<1xf32>
      %18 = vector.shape_cast %17 : vector<1xf32> to vector<1x1x1xf32>
      %19 = vector.extract %18[0, 0, 0] : f32 from vector<1x1x1xf32>
      %c0_13 = arith.constant 0 : index
      %c0_14 = arith.constant 0 : index
      %20 = memref.load %arg3[%c0_13, %c0_14] : memref<1x1xf32, #tpu.memory_space<smem>>
      memref.store %19, %arg3[%c0_13, %c0_14] : memref<1x1xf32, #tpu.memory_space<smem>>
    } else {
    }
    return
  }
  func.func @transform_0(%arg0: i32) -> (i32, i32) {
    %c0_i32 = arith.constant 0 : i32
    %c0_i32_0 = arith.constant 0 : i32
    return %arg0, %c0_i32 : i32, i32
  }
  func.func @transform_1(%arg0: i32) -> (i32, i32) {
    %c0_i32 = arith.constant 0 : i32
    %c0_i32_0 = arith.constant 0 : i32
    return %arg0, %c0_i32 : i32, i32
  }
  func.func @transform_2(%arg0: i32) -> (i32, i32) {
    %c0_i32 = arith.constant 0 : i32
    %c0_i32_0 = arith.constant 0 : i32
    %c0_i32_1 = arith.constant 0 : i32
    return %c0_i32, %c0_i32_0 : i32, i32
  }
}

</mosaic_0001>

<llo_original>
// kernel: tpu_custom_call.1
$region0: #{tpu_custom_call.1}
  #allocation0 [shape = 'u32[]', space=smem, size = 0x4, offset = 0x4, fixed_abs, tag = 'smem constant byte address 0x4 - core index']
  #allocation1 [shape = 'u32[144,128]{1,0:T(1,128)}', space=vmem, size = 0x12000, scoped, tag = 'internal scratch']
  #allocation2 [shape = 'f32[8,128]{1,0:T(8,128)}', space=vmem, size = 0x1000, scoped, tag = 'scratch operand']
  %s0 = inlined_call_operand.hbm [shape: f32[16,128], index: 0, kind: input, shape index: {}]
  %s1 = inlined_call_operand.hbm [shape: f32[16,128], index: 1, kind: input, shape index: {}]
  %s2 = inlined_call_operand.hbm [shape: f32[1,1], index: 2, kind: output, shape index: {}]
  %s3 = sld [smem:[#allocation0]]
  $region34: #{tpu_custom_call.1} parent=0
    _
  %s5 = ssub.s32 1, %s3
  %s6 = scalar_select 0, %s5, %s3
  $region1: #{tpu_custom_call.1} parent=0
    #allocation3 [shape = 'u8[8192]{0}', space=vmem, size = 0x2000, scoped, tag = 'input window, operand 0, single buffered']
    #allocation4 [shape = 's32[1]{0}', space=sflag, size = 0x4, scoped, tag = 'scoped memory for tpu_custom_call.1']
    #allocation5 [shape = 's32[1]{0}', space=sflag, size = 0x4, scoped, tag = 'scoped memory for tpu_custom_call.1']
    #allocation6 [shape = 'u8[8192]{0}', space=vmem, size = 0x2000, scoped, tag = 'input window, operand 1, single buffered']
    #allocation7 [shape = 's32[1]{0}', space=sflag, size = 0x4, scoped, tag = 'scoped memory for tpu_custom_call.1']
    #allocation8 [shape = 'u8[512]{0}', space=smem, size = 0x200, scoped, tag = 'output window, operand 0, single buffered']
    %7 = vsyncpa [#allocation4], 0
    %8 = vsyncpa [#allocation7], 0
    %9 = vsyncpa [#allocation5], 0
    // Predicated region
    $region2: #{tpu_custom_call.1} parent=1 // pred_check
      _
    $region3: #{tpu_custom_call.1} parent=1 // pred_check_branch
      %11 = sbr.rel (0) target = $region5
    $region4: #{tpu_custom_call.1} parent=1 // pred_region
      %s13 = ssub.s32 256, 256
      %14 = vsyncadd [#allocation4], %s13
      %s15 = sshll.u32 [#allocation3], 4
      %s16 = int_to_ptr.vmem [resolvable:$true] %s15
      %21 = dma.hbm_to_vmem [thread:$0]  %s0, 256, %s16, [#allocation4], 128, 128, 8
    $region5: #{tpu_custom_call.1} parent=1 // pred_fallthru
      _
    // Predicated region
    $region6: #{tpu_custom_call.1} parent=1 // pred_check
      _
    $region7: #{tpu_custom_call.1} parent=1 // pred_check_branch
      %23 = sbr.rel (0) target = $region9
    $region8: #{tpu_custom_call.1} parent=1 // pred_region
      %s25 = ssub.s32 256, 256
      %26 = vsyncadd [#allocation7], %s25
      %s27 = sshll.u32 [#allocation6], 4
      %s28 = int_to_ptr.vmem [resolvable:$true] %s27
      %33 = dma.hbm_to_vmem [thread:$0]  %s1, 256, %s28, [#allocation7], 128, 128, 8
    $region9: #{tpu_custom_call.1} parent=1 // pred_fallthru
      _
    // Predicated region
    $region10: #{tpu_custom_call.1} parent=1 // pred_check
      _
    $region11: #{tpu_custom_call.1} parent=1 // pred_check_branch
      %35 = sbr.rel (0) target = $region13
    $region12: #{tpu_custom_call.1} parent=1 // pred_region
      %36 = dma.done [#allocation4], 256
    $region13: #{tpu_custom_call.1} parent=1 // pred_fallthru
      _
    // Predicated region
    $region14: #{tpu_custom_call.1} parent=1 // pred_check
      _
    $region15: #{tpu_custom_call.1} parent=1 // pred_check_branch
      %38 = sbr.rel (0) target = $region17
    $region16: #{tpu_custom_call.1} parent=1 // pred_region
      %39 = dma.done [#allocation7], 256
    $region17: #{tpu_custom_call.1} parent=1 // pred_fallthru
      _
    %p40 = scmp.eq.s32.totalorder 0, 0
    // Predicated region
    $region18: #{tpu_custom_call.1} parent=1 // pred_check
      %p41 = pneg %p40
    $region19: #{tpu_custom_call.1} parent=1 // pred_check_branch
      %43 = sbr.rel (%p41) target = $region21
    $region20: #{tpu_custom_call.1} parent=1 // pred_region
      %44 = vst [vmem:[#allocation2] sm:$0xff] 0.0
    $region21: #{tpu_custom_call.1} parent=1 // pred_fallthru
      _
    %v45 = vld [vmem:[#allocation3] sm:$0xff]
    %v46 = vld [vmem:[#allocation3 + $0x8] sm:$0xff]
    %v47 = vld [vmem:[#allocation6] sm:$0xff]
    %v48 = vld [vmem:[#allocation6 + $0x8] sm:$0xff]
    %v49 = vsub.f32 %v45, %v47
    %v50 = vsub.f32 %v46, %v48
    %v51 = vld [vmem:[#allocation2] sm:$0xff]
    %v52 = vmul.f32 %v49, %v49
    %v53 = vmul.f32 %v50, %v50
    %v54 = vadd.f32 %v52, %v53
    %v55 = vadd.f32 %v51, %v54
    %56 = vst [vmem:[#allocation2] sm:$0xff] %v55
    // Predicated region
    $region22: #{tpu_custom_call.1} parent=1 // pred_check
      %p57 = pneg %p40
    $region23: #{tpu_custom_call.1} parent=1 // pred_check_branch
      %59 = sbr.rel (%p57) target = $region25
    $region24: #{tpu_custom_call.1} parent=1 // pred_region
      %v60 = vld [vmem:[#allocation2] sm:$0xff]
      %61 = vadd.xlane.f32.xlu0 %v60
      %v62 = vpop.xlane.xlu0 %61
      %v63 = vrot.slane %v62, 4
      %v64 = vadd.f32 %v62, %v63
      %v65 = vrot.slane %v64, 2
      %v66 = vadd.f32 %v64, %v65
      %v67 = vrot.slane %v66, 1
      %v68 = vadd.f32 %v66, %v67
      %s69 = vtos %v68
      %s70 = scalar_lea.smem [#allocation8], 0
      %71 = sst [smem:[%s70]] %s69
    $region25: #{tpu_custom_call.1} parent=1 // pred_fallthru
      _
    // Predicated region
    $region26: #{tpu_custom_call.1} parent=1 // pred_check
      _
    $region27: #{tpu_custom_call.1} parent=1 // pred_check_branch
      %73 = sbr.rel (0) target = $region29
    $region28: #{tpu_custom_call.1} parent=1 // pred_region
      %s75 = ssub.s32 16, 16
      %76 = vsyncadd [#allocation5], %s75
      %79 = dma.smem_to_hbm [#allocation8], 16, %s2, [#allocation5]
    $region29: #{tpu_custom_call.1} parent=1 // pred_fallthru
      _
    // Predicated region
    $region30: #{tpu_custom_call.1} parent=1 // pred_check
      _
    $region31: #{tpu_custom_call.1} parent=1 // pred_check_branch
      %81 = sbr.rel (0) target = $region33
    $region32: #{tpu_custom_call.1} parent=1 // pred_region
      %82 = dma.done [#allocation5], 16
    $region33: #{tpu_custom_call.1} parent=1 // pred_fallthru
      _
    %83 = sfence
    %84 = vsyncpa [#allocation4], 1
    %85 = vsyncpa [#allocation7], 1
    %86 = vsyncpa [#allocation5], 1

</llo_original>
